<compile_context>
chip_gen: v5e
topology: v5e:2x2
jax: 0.10.0
libtpu: 0.0.40
codegen_flags: <defaults>
</compile_context>

<pallas_src>
import jax
import jax.numpy as jnp
from jax.experimental import pallas as pl
from jax.experimental.pallas import tpu as pltpu

_NEG_SLOPE = 0.01          # F.leaky_relu default negative_slope
_LANE = 128
_SUBLANE = 8
_MAX_BATCH_TILE = 4096     # rows per grid step (in+out+intermediates << 32 MiB VMEM)
_MIN_SPLIT_ROWS = 256      # only force >=2 grid steps once a tile would exceed this


def _round_up(x, m):
    return ((x + m - 1) // m) * m


def _fused_mlp_kernel(x_ref, *refs):
    """refs = (w1, b1, w2, b2, ..., wn, bn, out_ref).

    Statically unrolled layer chain; leaky_relu after every layer except the
    last, exactly like the PyTorch forward.  All intermediates live in VMEM /
    vregs; only the final (tb, action_size) tile is stored.
    """
    out_ref = refs[-1]
    wb = refs[:-1]
    n_layers = len(wb) // 2
    z = x_ref[...]                       # (tb, state_size) -- true width, no HBM pad
    for i in range(n_layers):
        w = wb[2 * i][...]
        b = wb[2 * i + 1][...]           # (1, Dout) -> broadcasts over batch tile
        z = jnp.dot(z, w, preferred_element_type=jnp.float32) + b
        if i < n_layers - 1:
            z = jnp.where(z > 0, z, _NEG_SLOPE * z)
    out_ref[...] = z.astype(out_ref.dtype)


def init_qnetwork_params(key, state_size, action_size, hidden_layers):
    """Init mirroring nn.Linear default: U(-1/sqrt(fan_in), 1/sqrt(fan_in)).

    Weights are stored transposed vs. PyTorch, i.e. [in_features, out_features].
    """
    sizes = [state_size] + list(hidden_layers) + [action_size]
    params = []
    for i in range(len(sizes) - 1):
        fan_in, fan_out = sizes[i], sizes[i + 1]
        key, kw, kb = jax.random.split(key, 3)
        bound = 1.0 / jnp.sqrt(float(fan_in))
        w = jax.random.uniform(kw, (fan_in, fan_out), jnp.float32, -bound, bound)
        b = jax.random.uniform(kb, (fan_out,), jnp.float32, -bound, bound)
        params.append((w, b))
    return params


def pack_qnetwork_params(params):
    """Pad weights/biases once into MXU-friendly f32 slabs (hoisted out of the
    per-call path).  Hidden dims pad to 128 lanes; the first layer's K dim and the
    last layer's N dim keep their TRUE sizes so the HBM-facing activation I/O can
    stay unpadded.  Zero padding keeps the math exact."""
    packed = []
    n = len(params)
    for idx, (w, b) in enumerate(params):
        din, dout = w.shape
        din_p = din if idx == 0 else _round_up(din, _LANE)
        dout_p = dout if idx == n - 1 else _round_up(dout, _LANE)
        w_p = jnp.zeros((din_p, dout_p), jnp.float32).at[:din, :dout].set(w)
        b_p = jnp.zeros((1, dout_p), jnp.float32).at[0, :dout].set(b)
        packed.append((w_p, b_p))
    return packed


def qnetwork_forward(packed_params, state):
    """Fused forward pass.  state: [B, state_size] -> [B, action_size]."""
    B, din = state.shape
    assert din == packed_params[0][0].shape[0], "state width != first-layer fan_in"
    action_size = packed_params[-1][0].shape[1]

    # ---- batch tiling: remainder-aware, >=2 parallel steps for big batches ----
    b8 = _round_up(B, _SUBLANE)
    n_tiles = pl.cdiv(b8, _MAX_BATCH_TILE)
    if n_tiles < 2 and b8 >= 2 * _MIN_SPLIT_ROWS:
        n_tiles = 2                      # let v7x's 2 TensorCores both get work
    tb = _round_up(pl.cdiv(b8, n_tiles), _SUBLANE)
    b_pad = n_tiles * tb                 # at most (n_tiles-1)*8 + 7 extra rows

    x = state.astype(jnp.float32)
    if b_pad != B:
        x = jnp.pad(x, ((0, b_pad - B), (0, 0)))   # pad batch rows only (cheap)

    flat_args = [x]
    in_specs = [pl.BlockSpec((tb, din), lambda i: (i, 0))]
    for w_p, b_p in packed_params:
        flat_args.extend([w_p, b_p])
        in_specs.append(pl.BlockSpec(w_p.shape, lambda i: (0, 0)))   # resident
        in_specs.append(pl.BlockSpec(b_p.shape, lambda i: (0, 0)))   # resident

    # Advisory cost hint so XLA can overlap this tiny call with the rest of the step.
    flops = 2 * b_pad * sum(int(w.shape[0]) * int(w.shape[1]) for w, _ in packed_params)
    bytes_accessed = (
        int(x.size) * 4
        + sum(int(w.size) * 4 + int(b.size) * 4 for w, b in packed_params)
        + b_pad * action_size * 4
    )
    cost = pl.CostEstimate(flops=flops, transcendentals=0, bytes_accessed=bytes_accessed)

    out = pl.pallas_call(
        _fused_mlp_kernel,
        out_shape=jax.ShapeDtypeStruct((b_pad, action_size), jnp.float32),
        grid=(n_tiles,),
        in_specs=in_specs,
        out_specs=pl.BlockSpec((tb, action_size), lambda i: (i, 0)),
        compiler_params=pltpu.CompilerParams(
            dimension_semantics=("parallel",),
            vmem_limit_bytes=32 * 1024 * 1024,   # above v5e's 16 MiB scoped default
        ),
        cost_estimate=cost,
    )(*flat_args)

    return out if b_pad == B else out[:B]


def _reference_forward(params, state):
    z = state
    for i, (w, b) in enumerate(params):
        z = z @ w + b
        if i < len(params) - 1:
            z = jnp.where(z > 0, z, _NEG_SLOPE * z)
    return z


if __name__ == "__main__":
    # Small shapes consistent with the module's forward.
    batch = 2
    state_size = 8
    hidden_layers = [32, 32]
    action_size = 4

    key = jax.random.PRNGKey(0)
    key, kx = jax.random.split(key)
    state = jax.random.normal(kx, (batch, state_size), jnp.float32)

    params = init_qnetwork_params(key, state_size, action_size, hidden_layers)
    packed = pack_qnetwork_params(params)   # padding hoisted out of the call path

    out = jax.block_until_ready(qnetwork_forward(packed, state))
    ref = _reference_forward(params, state)
    assert out.shape == (batch, action_size)
    assert jnp.allclose(out, ref, atol=1e-4, rtol=1e-4), "small-batch mismatch"

    # Exercise the multi-step grid path + remainder handling (realistic replay batch).
    key, kx2 = jax.random.split(key)
    big_state = jax.random.normal(kx2, (1000, state_size), jnp.float32)
    big_out = jax.block_until_ready(qnetwork_forward(packed, big_state))
    big_ref = _reference_forward(params, big_state)
    assert big_out.shape == (1000, action_size)
    assert jnp.allclose(big_out, big_ref, atol=1e-4, rtol=1e-4), "gridded-batch mismatch"

    print("KERNEL_OK")
</pallas_src>

<mosaic_0001>
module attributes {stable_mosaic.version = 11 : i64} {
  func.func @_fused_mlp_kernel(%arg0: i32, %arg1: memref<8x8xf32, #tpu.memory_space<vmem>>, %arg2: memref<8x128xf32, #tpu.memory_space<vmem>>, %arg3: memref<1x128xf32, #tpu.memory_space<vmem>>, %arg4: memref<128x128xf32, #tpu.memory_space<vmem>>, %arg5: memref<1x128xf32, #tpu.memory_space<vmem>>, %arg6: memref<128x4xf32, #tpu.memory_space<vmem>>, %arg7: memref<1x4xf32, #tpu.memory_space<vmem>>, %arg8: memref<8x4xf32, #tpu.memory_space<vmem>>) attributes {dimension_semantics = [#tpu.dimension_semantics<parallel>], iteration_bounds = array<i64: 1>, scalar_prefetch = 0 : i64, scratch_operands = 0 : i64, tpu.core_type = #tpu.core_type<tc>, window_params = [{transform_indices = @transform_0, window_bounds = array<i64: 8, 8>}, {pipeline_mode = #tpu.pipeline_mode<synchronous>, transform_indices = @transform_1, window_bounds = array<i64: 8, 128>}, {pipeline_mode = #tpu.pipeline_mode<synchronous>, transform_indices = @transform_2, window_bounds = array<i64: 1, 128>}, {pipeline_mode = #tpu.pipeline_mode<synchronous>, transform_indices = @transform_3, window_bounds = array<i64: 128, 128>}, {pipeline_mode = #tpu.pipeline_mode<synchronous>, transform_indices = @transform_4, window_bounds = array<i64: 1, 128>}, {pipeline_mode = #tpu.pipeline_mode<synchronous>, transform_indices = @transform_5, window_bounds = array<i64: 128, 4>}, {pipeline_mode = #tpu.pipeline_mode<synchronous>, transform_indices = @transform_6, window_bounds = array<i64: 1, 4>}, {transform_indices = @transform_7, window_bounds = array<i64: 8, 4>}]} {
    %c0 = arith.constant 0 : index
    %c0_0 = arith.constant 0 : index
    %0 = vector.load %arg1[%c0, %c0_0] : memref<8x8xf32, #tpu.memory_space<vmem>>, vector<8x8xf32>
    %c0_1 = arith.constant 0 : index
    %c0_2 = arith.constant 0 : index
    %1 = vector.load %arg2[%c0_1, %c0_2] : memref<8x128xf32, #tpu.memory_space<vmem>>, vector<8x128xf32>
    %c0_3 = arith.constant 0 : index
    %c0_4 = arith.constant 0 : index
    %2 = vector.load %arg3[%c0_3, %c0_4] : memref<1x128xf32, #tpu.memory_space<vmem>>, vector<1x128xf32>
    %cst = arith.constant dense<0.000000e+00> : vector<8x128xf32>
    %3 = tpu.matmul %0, %1, %cst {dimension_numbers = #tpu.dot_dimension_numbers<[1], [0], [0], [1], [0, 0, 1, 1], [], []>} : vector<8x8xf32>, vector<8x128xf32>, vector<8x128xf32> -> vector<8x128xf32>
    %4 = vector.broadcast %2 : vector<1x128xf32> to vector<8x128xf32>
    %5 = arith.addf %3, %4 : vector<8x128xf32>
    %cst_5 = arith.constant 0.000000e+00 : f32
    %6 = vector.broadcast %cst_5 : f32 to vector<8x128xf32>
    %7 = arith.cmpf ogt, %5, %6 : vector<8x128xf32>
    %cst_6 = arith.constant 0.00999999977 : f32
    %8 = vector.broadcast %cst_6 : f32 to vector<8x128xf32>
    %9 = arith.mulf %8, %5 : vector<8x128xf32>
    %10 = arith.select %7, %5, %9 : vector<8x128xi1>, vector<8x128xf32>
    %c0_7 = arith.constant 0 : index
    %c0_8 = arith.constant 0 : index
    %11 = vector.load %arg4[%c0_7, %c0_8] : memref<128x128xf32, #tpu.memory_space<vmem>>, vector<128x128xf32>
    %c0_9 = arith.constant 0 : index
    %c0_10 = arith.constant 0 : index
    %12 = vector.load %arg5[%c0_9, %c0_10] : memref<1x128xf32, #tpu.memory_space<vmem>>, vector<1x128xf32>
    %cst_11 = arith.constant dense<0.000000e+00> : vector<8x128xf32>
    %13 = tpu.matmul %10, %11, %cst_11 {dimension_numbers = #tpu.dot_dimension_numbers<[1], [0], [0], [1], [0, 0, 1, 1], [], []>} : vector<8x128xf32>, vector<128x128xf32>, vector<8x128xf32> -> vector<8x128xf32>
    %14 = vector.broadcast %12 : vector<1x128xf32> to vector<8x128xf32>
    %15 = arith.addf %13, %14 : vector<8x128xf32>
    %cst_12 = arith.constant 0.000000e+00 : f32
    %16 = vector.broadcast %cst_12 : f32 to vector<8x128xf32>
    %17 = arith.cmpf ogt, %15, %16 : vector<8x128xf32>
    %cst_13 = arith.constant 0.00999999977 : f32
    %18 = vector.broadcast %cst_13 : f32 to vector<8x128xf32>
    %19 = arith.mulf %18, %15 : vector<8x128xf32>
    %20 = arith.select %17, %15, %19 : vector<8x128xi1>, vector<8x128xf32>
    %c0_14 = arith.constant 0 : index
    %c0_15 = arith.constant 0 : index
    %21 = vector.load %arg6[%c0_14, %c0_15] : memref<128x4xf32, #tpu.memory_space<vmem>>, vector<128x4xf32>
    %c0_16 = arith.constant 0 : index
    %c0_17 = arith.constant 0 : index
    %22 = vector.load %arg7[%c0_16, %c0_17] : memref<1x4xf32, #tpu.memory_space<vmem>>, vector<1x4xf32>
    %cst_18 = arith.constant dense<0.000000e+00> : vector<8x4xf32>
    %23 = tpu.matmul %20, %21, %cst_18 {dimension_numbers = #tpu.dot_dimension_numbers<[1], [0], [0], [1], [0, 0, 1, 1], [], []>} : vector<8x128xf32>, vector<128x4xf32>, vector<8x4xf32> -> vector<8x4xf32>
    %24 = vector.broadcast %22 : vector<1x4xf32> to vector<8x4xf32>
    %25 = arith.addf %23, %24 : vector<8x4xf32>
    %c0_19 = arith.constant 0 : index
    %c0_20 = arith.constant 0 : index
    %26 = vector.load %arg8[%c0_19, %c0_20] : memref<8x4xf32, #tpu.memory_space<vmem>>, vector<8x4xf32>
    tpu.vector_store %arg8[%c0_19, %c0_20], %25 {strides = array<i32>} : memref<8x4xf32, #tpu.memory_space<vmem>>, vector<8x4xf32>,
    return
  }
  func.func @transform_0(%arg0: i32) -> (i32, i32) {
    %c0_i32 = arith.constant 0 : i32
    %c0_i32_0 = arith.constant 0 : i32
    return %arg0, %c0_i32 : i32, i32
  }
  func.func @transform_1(%arg0: i32) -> (i32, i32) {
    %c0_i32 = arith.constant 0 : i32
    %c0_i32_0 = arith.constant 0 : i32
    %c0_i32_1 = arith.constant 0 : i32
    return %c0_i32, %c0_i32_0 : i32, i32
  }
  func.func @transform_2(%arg0: i32) -> (i32, i32) {
    %c0_i32 = arith.constant 0 : i32
    %c0_i32_0 = arith.constant 0 : i32
    %c0_i32_1 = arith.constant 0 : i32
    return %c0_i32, %c0_i32_0 : i32, i32
  }
  func.func @transform_3(%arg0: i32) -> (i32, i32) {
    %c0_i32 = arith.constant 0 : i32
    %c0_i32_0 = arith.constant 0 : i32
    %c0_i32_1 = arith.constant 0 : i32
    return %c0_i32, %c0_i32_0 : i32, i32
  }
  func.func @transform_4(%arg0: i32) -> (i32, i32) {
    %c0_i32 = arith.constant 0 : i32
    %c0_i32_0 = arith.constant 0 : i32
    %c0_i32_1 = arith.constant 0 : i32
    return %c0_i32, %c0_i32_0 : i32, i32
  }
  func.func @transform_5(%arg0: i32) -> (i32, i32) {
    %c0_i32 = arith.constant 0 : i32
    %c0_i32_0 = arith.constant 0 : i32
    %c0_i32_1 = arith.constant 0 : i32
    return %c0_i32, %c0_i32_0 : i32, i32
  }
  func.func @transform_6(%arg0: i32) -> (i32, i32) {
    %c0_i32 = arith.constant 0 : i32
    %c0_i32_0 = arith.constant 0 : i32
    %c0_i32_1 = arith.constant 0 : i32
    return %c0_i32, %c0_i32_0 : i32, i32
  }
  func.func @transform_7(%arg0: i32) -> (i32, i32) {
    %c0_i32 = arith.constant 0 : i32
    %c0_i32_0 = arith.constant 0 : i32
    return %arg0, %c0_i32 : i32, i32
  }
}

</mosaic_0001>

<llo_original>
// kernel: tpu_custom_call.1
$region0: #{tpu_custom_call.1}
  #allocation0 [shape = 'u32[]', space=smem, size = 0x4, offset = 0x4, fixed_abs, tag = 'smem constant byte address 0x4 - core index']
  #allocation1 [shape = 'u32[72,128]{1,0:T(1,128)}', space=vmem, size = 0x9000, scoped, tag = 'internal scratch']
  %s0 = inlined_call_operand.hbm [shape: f32[8,8], index: 0, kind: input, shape index: {}]
  %s1 = inlined_call_operand.hbm [shape: f32[8,128], index: 1, kind: input, shape index: {}]
  %s2 = inlined_call_operand.vmem [shape: f32[1,128], index: 2, kind: input, shape index: {}]
  %s3 = inlined_call_operand.vmem [shape: f32[128,128], index: 3, kind: input, shape index: {}]
  %s4 = inlined_call_operand.vmem [shape: f32[1,128], index: 4, kind: input, shape index: {}]
  %s5 = inlined_call_operand.vmem [shape: f32[128,4], index: 5, kind: input, shape index: {}]
  %s6 = inlined_call_operand.vmem [shape: f32[1,4], index: 6, kind: input, shape index: {}]
  %s7 = inlined_call_operand.vmem [shape: f32[8,4], index: 7, kind: output, shape index: {}]
  %s8 = sld [smem:[#allocation0]]
  $region46: #{tpu_custom_call.1} parent=0
    _
  %s10 = ssub.s32 1, %s8
  %s11 = scalar_select 0, %s10, %s8
  $region1: #{tpu_custom_call.1} parent=0
    #allocation2 [shape = 'u8[4096]{0}', space=vmem, size = 0x1000, scoped, tag = 'input window, operand 0, single buffered']
    #allocation3 [shape = 's32[1]{0}', space=sflag, size = 0x4, scoped, tag = 'scoped memory for tpu_custom_call.1']
    #allocation4 [shape = 'u8[4096]{0}', space=vmem, size = 0x1000, scoped, tag = 'input window, operand 1, single buffered']
    #allocation5 [shape = 's32[1]{0}', space=sflag, size = 0x4, scoped, tag = 'scoped memory for tpu_custom_call.1']
    %12 = vsyncpa [#allocation3], 0
    %13 = vsyncpa [#allocation5], 0
    // Predicated region
    $region2: #{tpu_custom_call.1} parent=1 // pred_check
      _
    $region3: #{tpu_custom_call.1} parent=1 // pred_check_branch
      %15 = sbr.rel (0) target = $region5
    $region4: #{tpu_custom_call.1} parent=1 // pred_region
      %17 = vsyncadd [#allocation3], 0
      %s19 = sshll.u32 %s0, 4
      %s20 = int_to_ptr.hbm [resolvable:$true] %s19
      %s21 = sshll.u32 [#allocation2], 4
      %s22 = int_to_ptr.vmem [resolvable:$true] %s21
      %24 = dma.hbm_to_vmem [thread:$0]  %s20, 128, %s22, [#allocation3]
    $region5: #{tpu_custom_call.1} parent=1 // pred_fallthru
      _
    // Predicated region
    $region6: #{tpu_custom_call.1} parent=1 // pred_check
      _
    $region7: #{tpu_custom_call.1} parent=1 // pred_check_branch
      %26 = sbr.rel (0) target = $region9
    $region8: #{tpu_custom_call.1} parent=1 // pred_region
      %28 = vsyncadd [#allocation5], 0
      %s30 = sshll.u32 %s1, 4
      %s31 = int_to_ptr.hbm [resolvable:$true] %s30
      %s32 = sshll.u32 [#allocation4], 4
      %s33 = int_to_ptr.vmem [resolvable:$true] %s32
      %35 = dma.hbm_to_vmem [thread:$0]  %s31, 128, %s33, [#allocation5]
    $region9: #{tpu_custom_call.1} parent=1 // pred_fallthru
      _
    // Predicated region
    $region10: #{tpu_custom_call.1} parent=1 // pred_check
      _
    $region11: #{tpu_custom_call.1} parent=1 // pred_check_branch
      %37 = sbr.rel (0) target = $region13
    $region12: #{tpu_custom_call.1} parent=1 // pred_region
      _
    $region13: #{tpu_custom_call.1} parent=1 // pred_fallthru
      _
    // Predicated region
    $region14: #{tpu_custom_call.1} parent=1 // pred_check
      _
    $region15: #{tpu_custom_call.1} parent=1 // pred_check_branch
      %39 = sbr.rel (0) target = $region17
    $region16: #{tpu_custom_call.1} parent=1 // pred_region
      _
    $region17: #{tpu_custom_call.1} parent=1 // pred_fallthru
      _
    // Predicated region
    $region18: #{tpu_custom_call.1} parent=1 // pred_check
      _
    $region19: #{tpu_custom_call.1} parent=1 // pred_check_branch
      %41 = sbr.rel (0) target = $region21
    $region20: #{tpu_custom_call.1} parent=1 // pred_region
      _
    $region21: #{tpu_custom_call.1} parent=1 // pred_fallthru
      _
    // Predicated region
    $region22: #{tpu_custom_call.1} parent=1 // pred_check
      _
    $region23: #{tpu_custom_call.1} parent=1 // pred_check_branch
      %43 = sbr.rel (0) target = $region25
    $region24: #{tpu_custom_call.1} parent=1 // pred_region
      _
    $region25: #{tpu_custom_call.1} parent=1 // pred_fallthru
      _
    // Predicated region
    $region26: #{tpu_custom_call.1} parent=1 // pred_check
      _
    $region27: #{tpu_custom_call.1} parent=1 // pred_check_branch
      %45 = sbr.rel (0) target = $region29
    $region28: #{tpu_custom_call.1} parent=1 // pred_region
      _
    $region29: #{tpu_custom_call.1} parent=1 // pred_fallthru
      _
    // Predicated region
    $region30: #{tpu_custom_call.1} parent=1 // pred_check
      _
    $region31: #{tpu_custom_call.1} parent=1 // pred_check_branch
      %47 = sbr.rel (0) target = $region33
    $region32: #{tpu_custom_call.1} parent=1 // pred_region
      %49 = dma.done [#allocation3], 128
    $region33: #{tpu_custom_call.1} parent=1 // pred_fallthru
      _
    // Predicated region
    $region34: #{tpu_custom_call.1} parent=1 // pred_check
      _
    $region35: #{tpu_custom_call.1} parent=1 // pred_check_branch
      %51 = sbr.rel (0) target = $region37
    $region36: #{tpu_custom_call.1} parent=1 // pred_region
      %53 = dma.done [#allocation5], 128
    $region37: #{tpu_custom_call.1} parent=1 // pred_fallthru
      _
    %v54 = vld [vmem:[#allocation2] sm:$0xff]
    %v55 = vld [vmem:[#allocation4] sm:$0xff]
    %v56 = vld [vmem:[%s2] sm:$0x1]
    %v58 = vperm.slane %v56, 0
    %vm60 = vcmask 64512
    %v62 = vsel %vm60, %v54, 0
    %64 = vmatpush.msra.mxu0 0.0
    %65 = vmatpush.msra.mxu0 0.0
    %66 = vmatpush.msra.mxu0 0.0
    %67 = vmatpush.msra.mxu0 0.0
    %68 = vmatpush.msra.mxu0 0.0
    %69 = vmatpush.msra.mxu0 0.0
    %70 = vmatpush.msra.mxu0 0.0
    %71 = vmatpush.msra.mxu0 0.0
    %72 = vmatpush.msra.mxu0 0.0
    %73 = vmatpush.msra.mxu0 0.0
    %74 = vmatpush.msra.mxu0 0.0
    %75 = vmatpush.msra.mxu0 0.0
    %76 = vmatpush.msra.mxu0 0.0
    %77 = vmatpush.msra.mxu0 0.0
    %78 = vmatpush.msra.mxu0 0.0
    %79 = vmatpush.msra.mxu0 %v55
    %80 = vmatmul.f32.gmra.mxu0 %v62
    %v81 = vpop.f32.mrf.mxu0
    %v82 = vadd.f32 %v58, %v81
    %83 = vdwg.mxu0
    %vm84 = vcmp.gt.f32.partialorder %v82, 0.0
    %v85 = vmul.f32 %v82, 0.01
    %v86 = vsel %vm84, %v82, %v85
    %v87 = vld [vmem:[%s3] sm:$0xff]
    %v88 = vld [vmem:[%s3 + $0x8] sm:$0xff]
    %v89 = vld [vmem:[%s3 + $0x10] sm:$0xff]
    %v90 = vld [vmem:[%s3 + $0x18] sm:$0xff]
    %v91 = vld [vmem:[%s3 + $0x20] sm:$0xff]
    %v92 = vld [vmem:[%s3 + $0x28] sm:$0xff]
    %v93 = vld [vmem:[%s3 + $0x30] sm:$0xff]
    %v94 = vld [vmem:[%s3 + $0x38] sm:$0xff]
    %v95 = vld [vmem:[%s3 + $0x40] sm:$0xff]
    %v96 = vld [vmem:[%s3 + $0x48] sm:$0xff]
    %v97 = vld [vmem:[%s3 + $0x50] sm:$0xff]
    %v98 = vld [vmem:[%s3 + $0x58] sm:$0xff]
    %v99 = vld [vmem:[%s3 + $0x60] sm:$0xff]
    %v100 = vld [vmem:[%s3 + $0x68] sm:$0xff]
    %v101 = vld [vmem:[%s3 + $0x70] sm:$0xff]
    %v102 = vld [vmem:[%s3 + $0x78] sm:$0xff]
    %v103 = vld [vmem:[%s4] sm:$0x1]
    %v105 = vperm.slane %v103, 0
    %107 = vmatpush.msra.mxu0 %v102
    %108 = vmatpush.msra.mxu0 %v101
    %109 = vmatpush.msra.mxu0 %v100
    %110 = vmatpush.msra.mxu0 %v99
    %111 = vmatpush.msra.mxu0 %v98
    %112 = vmatpush.msra.mxu0 %v97
    %113 = vmatpush.msra.mxu0 %v96
    %114 = vmatpush.msra.mxu0 %v95
    %115 = vmatpush.msra.mxu0 %v94
    %116 = vmatpush.msra.mxu0 %v93
    %117 = vmatpush.msra.mxu0 %v92
    %118 = vmatpush.msra.mxu0 %v91
    %119 = vmatpush.msra.mxu0 %v90
    %120 = vmatpush.msra.mxu0 %v89
    %121 = vmatpush.msra.mxu0 %v88
    %122 = vmatpush.msra.mxu0 %v87
    %123 = vmatmul.f32.gmra.mxu0 %v86
    %v124 = vpop.f32.mrf.mxu0
    %v125 = vadd.f32 %v105, %v124
    %126 = vdwg.mxu0
    %vm127 = vcmp.gt.f32.partialorder %v125, 0.0
    %v128 = vmul.f32 %v125, 0.01
    %v129 = vsel %vm127, %v125, %v128
    %v130 = vld [vmem:[%s5] sm:$0xff]
    %v131 = vld [vmem:[%s5 + $0x8] sm:$0xff]
    %v132 = vld [vmem:[%s5 + $0x10] sm:$0xff]
    %v133 = vld [vmem:[%s5 + $0x18] sm:$0xff]
    %v134 = vld [vmem:[%s5 + $0x20] sm:$0xff]
    %v135 = vld [vmem:[%s5 + $0x28] sm:$0xff]
    %v136 = vld [vmem:[%s5 + $0x30] sm:$0xff]
    %v137 = vld [vmem:[%s5 + $0x38] sm:$0xff]
    %v138 = vld [vmem:[%s5 + $0x40] sm:$0xff]
    %v139 = vld [vmem:[%s5 + $0x48] sm:$0xff]
    %v140 = vld [vmem:[%s5 + $0x50] sm:$0xff]
    %v141 = vld [vmem:[%s5 + $0x58] sm:$0xff]
    %v142 = vld [vmem:[%s5 + $0x60] sm:$0xff]
    %v143 = vld [vmem:[%s5 + $0x68] sm:$0xff]
    %v144 = vld [vmem:[%s5 + $0x70] sm:$0xff]
    %v145 = vld [vmem:[%s5 + $0x78] sm:$0xff]
    %v146 = vld [vmem:[%s6] sm:$0x1]
    %v148 = vperm.slane %v146, 0
    %150 = vmatpush.msra.mxu0 %v145
    %151 = vmatpush.msra.mxu0 %v144
    %152 = vmatpush.msra.mxu0 %v143
    %153 = vmatpush.msra.mxu0 %v142
    %154 = vmatpush.msra.mxu0 %v141
    %155 = vmatpush.msra.mxu0 %v140
    %156 = vmatpush.msra.mxu0 %v139
    %157 = vmatpush.msra.mxu0 %v138
    %158 = vmatpush.msra.mxu0 %v137
    %159 = vmatpush.msra.mxu0 %v136
    %160 = vmatpush.msra.mxu0 %v135
    %161 = vmatpush.msra.mxu0 %v134
    %162 = vmatpush.msra.mxu0 %v133
    %163 = vmatpush.msra.mxu0 %v132
    %164 = vmatpush.msra.mxu0 %v131
    %165 = vmatpush.msra.mxu0 %v130
    %166 = vmatmul.f32.gmra.mxu0 %v129
    %v167 = vpop.f32.mrf.mxu0
    %v168 = vadd.f32 %v148, %v167
    %169 = vdwg.mxu0
    %vm170 = vcmask 31744
    %171 = vst.msk [vmem:[%s7] sm:$0xff] %vm170, %v168
    // Predicated region
    $region38: #{tpu_custom_call.1} parent=1 // pred_check
      _
    $region39: #{tpu_custom_call.1} parent=1 // pred_check_branch
      %173 = sbr.rel (0) target = $region41
    $region40: #{tpu_custom_call.1} parent=1 // pred_region
      _
    $region41: #{tpu_custom_call.1} parent=1 // pred_fallthru
      _
    // Predicated region
    $region42: #{tpu_custom_call.1} parent=1 // pred_check
      _
    $region43: #{tpu_custom_call.1} parent=1 // pred_check_branch
      %175 = sbr.rel (0) target = $region45
    $region44: #{tpu_custom_call.1} parent=1 // pred_region
      _
    $region45: #{tpu_custom_call.1} parent=1 // pred_fallthru
      _
    %176 = vsyncpa [#allocation3], 1
    %177 = vsyncpa [#allocation5], 1

</llo_original>
